<compile_context>
chip_gen: v6e
topology: v6e:2x2x1
jax: 0.10.0
libtpu: 0.0.40
codegen_flags: <defaults>
</compile_context>

<pallas_src>
import functools

import jax
import jax.numpy as jnp
from jax.experimental import pallas as pl
from jax.experimental.pallas import tpu as pltpu


# ---------------------------------------------------------------------------
# In-kernel helpers
# ---------------------------------------------------------------------------
def _plcc_task_losses(yp_ref, y_ref, class_nbs, plcc_weight, rank_weight):
    """Vectorized per-task regression loss on stacked (T, B) inputs -> (T, 1)."""
    yp = yp_ref[...].astype(jnp.float32)      # (T, B) raw predictions
    y_raw = y_ref[...].astype(jnp.float32)    # (T, B) integer targets as f32
    T = yp.shape[0]

    # target = (target + 1) / (class_nb + 1), class_nb differs per task row.
    row = jax.lax.broadcasted_iota(jnp.int32, (T, 1), 0)
    inv_den = jnp.zeros((T, 1), jnp.float32)
    for t, c in enumerate(class_nbs):
        inv_den = jnp.where(row == t, 1.0 / (float(c) + 1.0), inv_den)
    y = (y_raw + 1.0) * inv_den

    # ---- plcc_loss (torch.std_mean unbiased=False -> population std) ----
    m_hat = jnp.mean(yp, axis=-1, keepdims=True)
    sigma_hat = jnp.sqrt(jnp.mean((yp - m_hat) ** 2, axis=-1, keepdims=True))
    ypn = (yp - m_hat) * pl.reciprocal(sigma_hat + 1e-08, approx=True)
    m = jnp.mean(y, axis=-1, keepdims=True)
    sigma = jnp.sqrt(jnp.mean((y - m) ** 2, axis=-1, keepdims=True))
    yn = (y - m) * pl.reciprocal(sigma + 1e-08, approx=True)
    loss0 = jnp.mean((ypn - yn) ** 2, axis=-1, keepdims=True) * 0.25
    rho = jnp.mean(ypn * yn, axis=-1, keepdims=True)
    loss1 = jnp.mean((rho * ypn - yn) ** 2, axis=-1, keepdims=True) * 0.25
    p_loss = (loss0 + loss1) * 0.5                          # (T, 1)

    # ---- rank_loss ----
    # In the reference, y.t() on a 1-D target is a no-op, so sign(y.t() - y) == 0
    # and the whole pairwise ranking term is identically zero for every input.
    # Reproduced literally without the dead (B, B) computation.
    r_loss = 0.0

    return plcc_weight * p_loss + rank_weight * r_loss      # (T, 1)


def _feat_norm_cbhw(ref):
    """feat_norm on a (C, B, HW) ref -> normalized (B, HW) f32 map."""
    C = ref.shape[0]
    # Unrolled VPU adds over full (B, HW) tiles (channel axis is the leading dim).
    a = jnp.abs(ref[0].astype(jnp.float32))
    for c in range(1, C):
        a = a + jnp.abs(ref[c].astype(jnp.float32))
    nmin = jnp.min(a, axis=-1, keepdims=True)               # (B, 1)
    nmax = jnp.max(a, axis=-1, keepdims=True)               # (B, 1)
    # Reference has no epsilon; a spatially constant map degenerates there too.
    return (a - nmin) * pl.reciprocal(nmax - nmin, approx=True)


# ---------------------------------------------------------------------------
# Fused kernels (single pallas_call for the whole SupervisedLoss forward)
# ---------------------------------------------------------------------------
def _fused_loss_sim_kernel(yp_ref, y_ref, icm_ref, te_ref, exp_ref,
                           losses_ref, sim_ref,
                           *, class_nbs, plcc_weight, rank_weight):
    losses_ref[...] = _plcc_task_losses(yp_ref, y_ref, class_nbs,
                                        plcc_weight, rank_weight)

    icm = _feat_norm_cbhw(icm_ref)
    te = _feat_norm_cbhw(te_ref)
    ex = _feat_norm_cbhw(exp_ref)
    hw = icm.shape[-1]
    # mean over (C=1, H, W) per sample, /3, then sum over B  ==  sum / (3*HW).
    prod = icm * te + icm * ex + te * ex                    # (B, HW)
    sim_ref[...] = jnp.reshape(jnp.sum(prod) * (1.0 / (3.0 * float(hw))), (1, 1))


def _fused_loss_kernel(yp_ref, y_ref, losses_ref,
                       *, class_nbs, plcc_weight, rank_weight):
    losses_ref[...] = _plcc_task_losses(yp_ref, y_ref, class_nbs,
                                        plcc_weight, rank_weight)


def fused_regression_losses(outputs, targets, class_nbs, plcc_weight, rank_weight,
                            feat_maps=None):
    """One pallas_call computing every per-task loss (and the sim term)."""
    T = len(outputs)
    B = outputs[0].shape[0]
    # Stack tasks into (T, B); targets stay integer, cast happens inside the kernel.
    yp = jnp.stack([jnp.reshape(o, (B,)) for o in outputs], axis=0)
    y = jnp.stack([jnp.reshape(t, (B,)) for t in targets], axis=0)

    common = dict(class_nbs=tuple(class_nbs),
                  plcc_weight=float(plcc_weight),
                  rank_weight=float(rank_weight))
    tspec = pl.BlockSpec((T, B), lambda i: (0, 0))
    loss_spec = pl.BlockSpec((T, 1), lambda i: (0, 0))

    if feat_maps is None:
        losses = pl.pallas_call(
            functools.partial(_fused_loss_kernel, **common),
            out_shape=jax.ShapeDtypeStruct((T, 1), jnp.float32),
            grid=(1,),
            in_specs=[tspec, tspec],
            out_specs=loss_spec,
            compiler_params=pltpu.CompilerParams(
                dimension_semantics=("arbitrary",)),
        )(yp, y)
        return losses[:, 0], None

    icm4, te4, ex4 = feat_maps
    Bf, C, H, W = icm4.shape
    HW = H * W

    def relayout(f):
        # (B, C, H, W) -> (C, B, HW): lane axis HW (multiple of 128), sublane
        # axis B (full 8). Keeps the source dtype (bf16 maps DMA at half bytes).
        return jnp.transpose(jnp.reshape(f, (Bf, C, HW)), (1, 0, 2))

    icm, te, ex = relayout(icm4), relayout(te4), relayout(ex4)
    fspec = pl.BlockSpec((C, Bf, HW), lambda i: (0, 0, 0))

    # TODO(synk): for production-sized feature maps, grid over B / HW tiles
    # (marked "parallel") with an accumulator instead of one full-array block,
    # to stay within v7x's 64 MiB VMEM and use both of its TensorCores.
    losses, sim = pl.pallas_call(
        functools.partial(_fused_loss_sim_kernel, **common),
        out_shape=(jax.ShapeDtypeStruct((T, 1), jnp.float32),
                   jax.ShapeDtypeStruct((1, 1), jnp.float32)),
        grid=(1,),
        in_specs=[tspec, tspec, fspec, fspec, fspec],
        out_specs=(loss_spec, pl.BlockSpec((1, 1), lambda i: (0, 0))),
        compiler_params=pltpu.CompilerParams(
            dimension_semantics=("arbitrary",),
            vmem_limit_bytes=32 * 1024 * 1024),
    )(yp, y, icm, te, ex)
    return losses[:, 0], sim[0, 0]


# ---------------------------------------------------------------------------
# Glue: supervised_loss forward (regression configuration)
# ---------------------------------------------------------------------------
def remove_no_annot(output, target):
    # TODO(synk): the reference remove_no_annot filters samples with missing
    # annotations (data-dependent output shape); here all samples are annotated.
    return output, target


def supervised_loss(target_dic, output_dict, regression, class_nb_targ_dic,
                    plcc_weight, rank_weight, task_to_train,
                    kl_temp=1, kl_interp=0.5, map_sim_term_weight=0,
                    distr_learn=False):
    loss_dic = {}
    names, outs, tgts, cnbs = [], [], [], []
    for target_name, target in target_dic.items():
        if task_to_train == 'all' or target_name == task_to_train:
            if 'master_output_' + target_name in output_dict:
                # TODO(synk): KL-distillation + CE branch not exercised by this config.
                raise NotImplementedError("master-output distillation branch")
            if regression:
                output, tgt = remove_no_annot(
                    output_dict['output_' + target_name], target)
                names.append(target_name)
                outs.append(output)
                tgts.append(tgt)
                cnbs.append(class_nb_targ_dic[target_name])
            elif distr_learn:
                # TODO(synk): distribution-learning KL branch not exercised by this config.
                raise NotImplementedError("distribution-learning branch")
            else:
                # TODO(synk): plain cross-entropy branch not exercised by this config.
                raise NotImplementedError("cross-entropy branch")

    feats = None
    if map_sim_term_weight > 0:
        feats = (output_dict['feat_icm'], output_dict['feat_te'],
                 output_dict['feat_exp'])

    task_losses, sim_term = fused_regression_losses(
        outs, tgts, cnbs, plcc_weight, rank_weight, feats)

    loss = jnp.sum(task_losses)
    for i, name in enumerate(names):
        loss_dic[f'loss_{name}'] = task_losses[i:i + 1]
    if task_to_train == 'all':
        loss = loss / 3
    if map_sim_term_weight > 0:
        loss = loss + map_sim_term_weight * sim_term
    loss_dic['loss'] = jnp.reshape(loss, (1,))
    return loss_dic


class SupervisedLoss:
    """JAX/Pallas port of the PyTorch SupervisedLoss module (regression config)."""

    def __init__(self, regression=False, class_nb_targ_dic=None, plcc_weight=1.0,
                 rank_weight=1.0, task_to_train='all', map_sim_term_weight=0.0,
                 distribution_learning=False):
        self.regression = regression
        self.class_nb_targ_dic = class_nb_targ_dic or {}
        self.plcc_weight = plcc_weight
        self.rank_weight = rank_weight
        self.task_to_train = task_to_train
        self.map_sim_term_weight = map_sim_term_weight
        self.distribution_learning = distribution_learning

    def __call__(self, target_dic, output_dict):
        return supervised_loss(target_dic, output_dict, self.regression,
                               self.class_nb_targ_dic, self.plcc_weight,
                               self.rank_weight, self.task_to_train,
                               map_sim_term_weight=self.map_sim_term_weight,
                               distr_learn=self.distribution_learning)


if __name__ == "__main__":
    key = jax.random.PRNGKey(0)
    B, C, H, W = 8, 4, 16, 16
    class_nb_dic = {'icm': 3, 'te': 3, 'exp': 4}
    keys = jax.random.split(key, 9)

    output_dict = {
        'output_icm': jax.random.normal(keys[0], (B, 1), jnp.float32),
        'output_te': jax.random.normal(keys[1], (B, 1), jnp.float32),
        'output_exp': jax.random.normal(keys[2], (B, 1), jnp.float32),
        'feat_icm': jax.random.normal(keys[3], (B, C, H, W), jnp.float32),
        'feat_te': jax.random.normal(keys[4], (B, C, H, W), jnp.float32),
        'feat_exp': jax.random.normal(keys[5], (B, C, H, W), jnp.float32),
    }
    target_dic = {
        'icm': jax.random.randint(keys[6], (B,), 0, class_nb_dic['icm']),
        'te': jax.random.randint(keys[7], (B,), 0, class_nb_dic['te']),
        'exp': jax.random.randint(keys[8], (B,), 0, class_nb_dic['exp']),
    }

    loss_mod = SupervisedLoss(regression=True,
                              class_nb_targ_dic=class_nb_dic,
                              plcc_weight=1.0,
                              rank_weight=0.5,
                              task_to_train='all',
                              map_sim_term_weight=0.3,
                              distribution_learning=False)

    loss_dic = loss_mod(target_dic, output_dict)
    jax.block_until_ready(loss_dic['loss'])
    assert loss_dic['loss'].shape == (1,)
    for name in ('icm', 'te', 'exp'):
        assert loss_dic[f'loss_{name}'].shape == (1,)
    print("KERNEL_OK")
</pallas_src>

<mosaic_0001>
module attributes {stable_mosaic.version = 11 : i64} {
  func.func @_fused_loss_sim_kernel(%arg0: i32, %arg1: memref<3x8xf32, #tpu.memory_space<vmem>>, %arg2: memref<3x8xi32, #tpu.memory_space<vmem>>, %arg3: memref<4x8x256xf32, #tpu.memory_space<vmem>>, %arg4: memref<4x8x256xf32, #tpu.memory_space<vmem>>, %arg5: memref<4x8x256xf32, #tpu.memory_space<vmem>>, %arg6: memref<3x1xf32, #tpu.memory_space<vmem>>, %arg7: memref<1x1xf32, #tpu.memory_space<vmem>>) attributes {dimension_semantics = [#tpu.dimension_semantics<arbitrary>], iteration_bounds = array<i64: 1>, scalar_prefetch = 0 : i64, scratch_operands = 0 : i64, tpu.core_type = #tpu.core_type<tc>, window_params = [{pipeline_mode = #tpu.pipeline_mode<synchronous>, transform_indices = @transform_0, window_bounds = array<i64: 3, 8>}, {pipeline_mode = #tpu.pipeline_mode<synchronous>, transform_indices = @transform_1, window_bounds = array<i64: 3, 8>}, {pipeline_mode = #tpu.pipeline_mode<synchronous>, transform_indices = @transform_2, window_bounds = array<i64: 4, 8, 256>}, {pipeline_mode = #tpu.pipeline_mode<synchronous>, transform_indices = @transform_3, window_bounds = array<i64: 4, 8, 256>}, {pipeline_mode = #tpu.pipeline_mode<synchronous>, transform_indices = @transform_4, window_bounds = array<i64: 4, 8, 256>}, {pipeline_mode = #tpu.pipeline_mode<synchronous>, transform_indices = @transform_5, window_bounds = array<i64: 3, 1>}, {pipeline_mode = #tpu.pipeline_mode<synchronous>, transform_indices = @transform_6, window_bounds = array<i64: 1, 1>}]} {
    %c0 = arith.constant 0 : index
    %c0_0 = arith.constant 0 : index
    %0 = vector.load %arg1[%c0, %c0_0] : memref<3x8xf32, #tpu.memory_space<vmem>>, vector<3x8xf32>
    %c0_1 = arith.constant 0 : index
    %c0_2 = arith.constant 0 : index
    %1 = vector.load %arg2[%c0_1, %c0_2] : memref<3x8xi32, #tpu.memory_space<vmem>>, vector<3x8xi32>
    %2 = arith.sitofp %1 : vector<3x8xi32> to vector<3x8xf32>
    %3 = tpu.iota {dimensions = array<i32: 0>} : vector<3x1xi32>
    %cst = arith.constant 0.000000e+00 : f32
    %4 = vector.broadcast %cst : f32 to vector<3x1xf32>
    %c0_i32 = arith.constant 0 : i32
    %5 = vector.broadcast %c0_i32 : i32 to vector<3x1xi32>
    %6 = arith.cmpi eq, %3, %5 : vector<3x1xi32>
    %cst_3 = arith.constant 2.500000e-01 : f32
    %7 = vector.broadcast %cst_3 : f32 to vector<3x1xf32>
    %8 = arith.select %6, %7, %4 : vector<3x1xi1>, vector<3x1xf32>
    %c1_i32 = arith.constant 1 : i32
    %9 = vector.broadcast %c1_i32 : i32 to vector<3x1xi32>
    %10 = arith.cmpi eq, %3, %9 : vector<3x1xi32>
    %cst_4 = arith.constant 2.500000e-01 : f32
    %11 = vector.broadcast %cst_4 : f32 to vector<3x1xf32>
    %12 = arith.select %10, %11, %8 : vector<3x1xi1>, vector<3x1xf32>
    %c2_i32 = arith.constant 2 : i32
    %13 = vector.broadcast %c2_i32 : i32 to vector<3x1xi32>
    %14 = arith.cmpi eq, %3, %13 : vector<3x1xi32>
    %cst_5 = arith.constant 2.000000e-01 : f32
    %15 = vector.broadcast %cst_5 : f32 to vector<3x1xf32>
    %16 = arith.select %14, %15, %12 : vector<3x1xi1>, vector<3x1xf32>
    %cst_6 = arith.constant 1.000000e+00 : f32
    %17 = vector.broadcast %cst_6 : f32 to vector<3x8xf32>
    %18 = arith.addf %2, %17 : vector<3x8xf32>
    %19 = vector.broadcast %16 : vector<3x1xf32> to vector<3x8xf32>
    %20 = arith.mulf %18, %19 : vector<3x8xf32>
    %cst_7 = arith.constant dense<0.000000e+00> : vector<3xf32>
    %21 = vector.multi_reduction <add>, %0, %cst_7 [1] : vector<3x8xf32> to vector<3xf32>
    %22 = vector.shape_cast %21 : vector<3xf32> to vector<3x1xf32>
    %cst_8 = arith.constant 8.000000e+00 : f32
    %23 = vector.broadcast %cst_8 : f32 to vector<3x1xf32>
    %24 = arith.divf %22, %23 : vector<3x1xf32>
    %25 = vector.broadcast %24 : vector<3x1xf32> to vector<3x8xf32>
    %26 = arith.subf %0, %25 : vector<3x8xf32>
    %27 = arith.mulf %26, %26 : vector<3x8xf32>
    %cst_9 = arith.constant dense<0.000000e+00> : vector<3xf32>
    %28 = vector.multi_reduction <add>, %27, %cst_9 [1] : vector<3x8xf32> to vector<3xf32>
    %29 = vector.shape_cast %28 : vector<3xf32> to vector<3x1xf32>
    %cst_10 = arith.constant 8.000000e+00 : f32
    %30 = vector.broadcast %cst_10 : f32 to vector<3x1xf32>
    %31 = arith.divf %29, %30 : vector<3x1xf32>
    %32 = math.sqrt %31 : vector<3x1xf32>
    %33 = vector.broadcast %24 : vector<3x1xf32> to vector<3x8xf32>
    %34 = arith.subf %0, %33 : vector<3x8xf32>
    %cst_11 = arith.constant 9.99999993E-9 : f32
    %35 = vector.broadcast %cst_11 : f32 to vector<3x1xf32>
    %36 = arith.addf %32, %35 : vector<3x1xf32>
    %37 = tpu.reciprocal %36 {approx = true} : vector<3x1xf32> -> vector<3x1xf32>
    %38 = vector.broadcast %37 : vector<3x1xf32> to vector<3x8xf32>
    %39 = arith.mulf %34, %38 : vector<3x8xf32>
    %cst_12 = arith.constant dense<0.000000e+00> : vector<3xf32>
    %40 = vector.multi_reduction <add>, %20, %cst_12 [1] : vector<3x8xf32> to vector<3xf32>
    %41 = vector.shape_cast %40 : vector<3xf32> to vector<3x1xf32>
    %cst_13 = arith.constant 8.000000e+00 : f32
    %42 = vector.broadcast %cst_13 : f32 to vector<3x1xf32>
    %43 = arith.divf %41, %42 : vector<3x1xf32>
    %44 = vector.broadcast %43 : vector<3x1xf32> to vector<3x8xf32>
    %45 = arith.subf %20, %44 : vector<3x8xf32>
    %46 = arith.mulf %45, %45 : vector<3x8xf32>
    %cst_14 = arith.constant dense<0.000000e+00> : vector<3xf32>
    %47 = vector.multi_reduction <add>, %46, %cst_14 [1] : vector<3x8xf32> to vector<3xf32>
    %48 = vector.shape_cast %47 : vector<3xf32> to vector<3x1xf32>
    %cst_15 = arith.constant 8.000000e+00 : f32
    %49 = vector.broadcast %cst_15 : f32 to vector<3x1xf32>
    %50 = arith.divf %48, %49 : vector<3x1xf32>
    %51 = math.sqrt %50 : vector<3x1xf32>
    %52 = vector.broadcast %43 : vector<3x1xf32> to vector<3x8xf32>
    %53 = arith.subf %20, %52 : vector<3x8xf32>
    %cst_16 = arith.constant 9.99999993E-9 : f32
    %54 = vector.broadcast %cst_16 : f32 to vector<3x1xf32>
    %55 = arith.addf %51, %54 : vector<3x1xf32>
    %56 = tpu.reciprocal %55 {approx = true} : vector<3x1xf32> -> vector<3x1xf32>
    %57 = vector.broadcast %56 : vector<3x1xf32> to vector<3x8xf32>
    %58 = arith.mulf %53, %57 : vector<3x8xf32>
    %59 = arith.subf %39, %58 : vector<3x8xf32>
    %60 = arith.mulf %59, %59 : vector<3x8xf32>
    %cst_17 = arith.constant dense<0.000000e+00> : vector<3xf32>
    %61 = vector.multi_reduction <add>, %60, %cst_17 [1] : vector<3x8xf32> to vector<3xf32>
    %62 = vector.shape_cast %61 : vector<3xf32> to vector<3x1xf32>
    %cst_18 = arith.constant 8.000000e+00 : f32
    %63 = vector.broadcast %cst_18 : f32 to vector<3x1xf32>
    %64 = arith.divf %62, %63 : vector<3x1xf32>
    %cst_19 = arith.constant 2.500000e-01 : f32
    %65 = vector.broadcast %cst_19 : f32 to vector<3x1xf32>
    %66 = arith.mulf %64, %65 : vector<3x1xf32>
    %67 = arith.mulf %39, %58 : vector<3x8xf32>
    %cst_20 = arith.constant dense<0.000000e+00> : vector<3xf32>
    %68 = vector.multi_reduction <add>, %67, %cst_20 [1] : vector<3x8xf32> to vector<3xf32>
    %69 = vector.shape_cast %68 : vector<3xf32> to vector<3x1xf32>
    %cst_21 = arith.constant 8.000000e+00 : f32
    %70 = vector.broadcast %cst_21 : f32 to vector<3x1xf32>
    %71 = arith.divf %69, %70 : vector<3x1xf32>
    %72 = vector.broadcast %71 : vector<3x1xf32> to vector<3x8xf32>
    %73 = arith.mulf %72, %39 : vector<3x8xf32>
    %74 = arith.subf %73, %58 : vector<3x8xf32>
    %75 = arith.mulf %74, %74 : vector<3x8xf32>
    %cst_22 = arith.constant dense<0.000000e+00> : vector<3xf32>
    %76 = vector.multi_reduction <add>, %75, %cst_22 [1] : vector<3x8xf32> to vector<3xf32>
    %77 = vector.shape_cast %76 : vector<3xf32> to vector<3x1xf32>
    %cst_23 = arith.constant 8.000000e+00 : f32
    %78 = vector.broadcast %cst_23 : f32 to vector<3x1xf32>
    %79 = arith.divf %77, %78 : vector<3x1xf32>
    %cst_24 = arith.constant 2.500000e-01 : f32
    %80 = vector.broadcast %cst_24 : f32 to vector<3x1xf32>
    %81 = arith.mulf %79, %80 : vector<3x1xf32>
    %82 = arith.addf %66, %81 : vector<3x1xf32>
    %cst_25 = arith.constant 5.000000e-01 : f32
    %83 = vector.broadcast %cst_25 : f32 to vector<3x1xf32>
    %84 = arith.mulf %82, %83 : vector<3x1xf32>
    %cst_26 = arith.constant 1.000000e+00 : f32
    %85 = vector.broadcast %cst_26 : f32 to vector<3x1xf32>
    %86 = arith.mulf %85, %84 : vector<3x1xf32>
    %cst_27 = arith.constant 0.000000e+00 : f32
    %87 = vector.broadcast %cst_27 : f32 to vector<3x1xf32>
    %88 = arith.addf %86, %87 : vector<3x1xf32>
    %c0_28 = arith.constant 0 : index
    %c0_29 = arith.constant 0 : index
    %89 = vector.load %arg6[%c0_28, %c0_29] : memref<3x1xf32, #tpu.memory_space<vmem>>, vector<3x1xf32>
    tpu.vector_store %arg6[%c0_28, %c0_29], %88 {strides = array<i32>} : memref<3x1xf32, #tpu.memory_space<vmem>>, vector<3x1xf32>,
    %c0_30 = arith.constant 0 : index
    %c0_31 = arith.constant 0 : index
    %c0_32 = arith.constant 0 : index
    %90 = vector.load %arg3[%c0_30, %c0_31, %c0_32] : memref<4x8x256xf32, #tpu.memory_space<vmem>>, vector<1x8x256xf32>
    %91 = vector.shape_cast %90 : vector<1x8x256xf32> to vector<8x256xf32>
    %92 = math.absf %91 : vector<8x256xf32>
    %c1 = arith.constant 1 : index
    %c0_33 = arith.constant 0 : index
    %c0_34 = arith.constant 0 : index
    %93 = vector.load %arg3[%c1, %c0_33, %c0_34] : memref<4x8x256xf32, #tpu.memory_space<vmem>>, vector<1x8x256xf32>
    %94 = vector.shape_cast %93 : vector<1x8x256xf32> to vector<8x256xf32>
    %95 = math.absf %94 : vector<8x256xf32>
    %96 = arith.addf %92, %95 : vector<8x256xf32>
    %c2 = arith.constant 2 : index
    %c0_35 = arith.constant 0 : index
    %c0_36 = arith.constant 0 : index
    %97 = vector.load %arg3[%c2, %c0_35, %c0_36] : memref<4x8x256xf32, #tpu.memory_space<vmem>>, vector<1x8x256xf32>
    %98 = vector.shape_cast %97 : vector<1x8x256xf32> to vector<8x256xf32>
    %99 = math.absf %98 : vector<8x256xf32>
    %100 = arith.addf %96, %99 : vector<8x256xf32>
    %c3 = arith.constant 3 : index
    %c0_37 = arith.constant 0 : index
    %c0_38 = arith.constant 0 : index
    %101 = vector.load %arg3[%c3, %c0_37, %c0_38] : memref<4x8x256xf32, #tpu.memory_space<vmem>>, vector<1x8x256xf32>
    %102 = vector.shape_cast %101 : vector<1x8x256xf32> to vector<8x256xf32>
    %103 = math.absf %102 : vector<8x256xf32>
    %104 = arith.addf %100, %103 : vector<8x256xf32>
    %cst_39 = arith.constant dense<0x7F800000> : vector<8xf32>
    %105 = vector.multi_reduction <minimumf>, %104, %cst_39 [1] : vector<8x256xf32> to vector<8xf32>
    %106 = vector.shape_cast %105 : vector<8xf32> to vector<8x1xf32>
    %cst_40 = arith.constant dense<0xFF800000> : vector<8xf32>
    %107 = vector.multi_reduction <maximumf>, %104, %cst_40 [1] : vector<8x256xf32> to vector<8xf32>
    %108 = vector.shape_cast %107 : vector<8xf32> to vector<8x1xf32>
    %109 = vector.broadcast %106 : vector<8x1xf32> to vector<8x256xf32>
    %110 = arith.subf %104, %109 : vector<8x256xf32>
    %111 = arith.subf %108, %106 : vector<8x1xf32>
    %112 = tpu.reciprocal %111 {approx = true} : vector<8x1xf32> -> vector<8x1xf32>
    %113 = vector.broadcast %112 : vector<8x1xf32> to vector<8x256xf32>
    %114 = arith.mulf %110, %113 : vector<8x256xf32>
    %c0_41 = arith.constant 0 : index
    %c0_42 = arith.constant 0 : index
    %c0_43 = arith.constant 0 : index
    %115 = vector.load %arg4[%c0_41, %c0_42, %c0_43] : memref<4x8x256xf32, #tpu.memory_space<vmem>>, vector<1x8x256xf32>
    %116 = vector.shape_cast %115 : vector<1x8x256xf32> to vector<8x256xf32>
    %117 = math.absf %116 : vector<8x256xf32>
    %c1_44 = arith.constant 1 : index
    %c0_45 = arith.constant 0 : index
    %c0_46 = arith.constant 0 : index
    %118 = vector.load %arg4[%c1_44, %c0_45, %c0_46] : memref<4x8x256xf32, #tpu.memory_space<vmem>>, vector<1x8x256xf32>
    %119 = vector.shape_cast %118 : vector<1x8x256xf32> to vector<8x256xf32>
    %120 = math.absf %119 : vector<8x256xf32>
    %121 = arith.addf %117, %120 : vector<8x256xf32>
    %c2_47 = arith.constant 2 : index
    %c0_48 = arith.constant 0 : index
    %c0_49 = arith.constant 0 : index
    %122 = vector.load %arg4[%c2_47, %c0_48, %c0_49] : memref<4x8x256xf32, #tpu.memory_space<vmem>>, vector<1x8x256xf32>
    %123 = vector.shape_cast %122 : vector<1x8x256xf32> to vector<8x256xf32>
    %124 = math.absf %123 : vector<8x256xf32>
    %125 = arith.addf %121, %124 : vector<8x256xf32>
    %c3_50 = arith.constant 3 : index
    %c0_51 = arith.constant 0 : index
    %c0_52 = arith.constant 0 : index
    %126 = vector.load %arg4[%c3_50, %c0_51, %c0_52] : memref<4x8x256xf32, #tpu.memory_space<vmem>>, vector<1x8x256xf32>
    %127 = vector.shape_cast %126 : vector<1x8x256xf32> to vector<8x256xf32>
    %128 = math.absf %127 : vector<8x256xf32>
    %129 = arith.addf %125, %128 : vector<8x256xf32>
    %cst_53 = arith.constant dense<0x7F800000> : vector<8xf32>
    %130 = vector.multi_reduction <minimumf>, %129, %cst_53 [1] : vector<8x256xf32> to vector<8xf32>
    %131 = vector.shape_cast %130 : vector<8xf32> to vector<8x1xf32>
    %cst_54 = arith.constant dense<0xFF800000> : vector<8xf32>
    %132 = vector.multi_reduction <maximumf>, %129, %cst_54 [1] : vector<8x256xf32> to vector<8xf32>
    %133 = vector.shape_cast %132 : vector<8xf32> to vector<8x1xf32>
    %134 = vector.broadcast %131 : vector<8x1xf32> to vector<8x256xf32>
    %135 = arith.subf %129, %134 : vector<8x256xf32>
    %136 = arith.subf %133, %131 : vector<8x1xf32>
    %137 = tpu.reciprocal %136 {approx = true} : vector<8x1xf32> -> vector<8x1xf32>
    %138 = vector.broadcast %137 : vector<8x1xf32> to vector<8x256xf32>
    %139 = arith.mulf %135, %138 : vector<8x256xf32>
    %c0_55 = arith.constant 0 : index
    %c0_56 = arith.constant 0 : index
    %c0_57 = arith.constant 0 : index
    %140 = vector.load %arg5[%c0_55, %c0_56, %c0_57] : memref<4x8x256xf32, #tpu.memory_space<vmem>>, vector<1x8x256xf32>
    %141 = vector.shape_cast %140 : vector<1x8x256xf32> to vector<8x256xf32>
    %142 = math.absf %141 : vector<8x256xf32>
    %c1_58 = arith.constant 1 : index
    %c0_59 = arith.constant 0 : index
    %c0_60 = arith.constant 0 : index
    %143 = vector.load %arg5[%c1_58, %c0_59, %c0_60] : memref<4x8x256xf32, #tpu.memory_space<vmem>>, vector<1x8x256xf32>
    %144 = vector.shape_cast %143 : vector<1x8x256xf32> to vector<8x256xf32>
    %145 = math.absf %144 : vector<8x256xf32>
    %146 = arith.addf %142, %145 : vector<8x256xf32>
    %c2_61 = arith.constant 2 : index
    %c0_62 = arith.constant 0 : index
    %c0_63 = arith.constant 0 : index
    %147 = vector.load %arg5[%c2_61, %c0_62, %c0_63] : memref<4x8x256xf32, #tpu.memory_space<vmem>>, vector<1x8x256xf32>
    %148 = vector.shape_cast %147 : vector<1x8x256xf32> to vector<8x256xf32>
    %149 = math.absf %148 : vector<8x256xf32>
    %150 = arith.addf %146, %149 : vector<8x256xf32>
    %c3_64 = arith.constant 3 : index
    %c0_65 = arith.constant 0 : index
    %c0_66 = arith.constant 0 : index
    %151 = vector.load %arg5[%c3_64, %c0_65, %c0_66] : memref<4x8x256xf32, #tpu.memory_space<vmem>>, vector<1x8x256xf32>
    %152 = vector.shape_cast %151 : vector<1x8x256xf32> to vector<8x256xf32>
    %153 = math.absf %152 : vector<8x256xf32>
    %154 = arith.addf %150, %153 : vector<8x256xf32>
    %cst_67 = arith.constant dense<0x7F800000> : vector<8xf32>
    %155 = vector.multi_reduction <minimumf>, %154, %cst_67 [1] : vector<8x256xf32> to vector<8xf32>
    %156 = vector.shape_cast %155 : vector<8xf32> to vector<8x1xf32>
    %cst_68 = arith.constant dense<0xFF800000> : vector<8xf32>
    %157 = vector.multi_reduction <maximumf>, %154, %cst_68 [1] : vector<8x256xf32> to vector<8xf32>
    %158 = vector.shape_cast %157 : vector<8xf32> to vector<8x1xf32>
    %159 = vector.broadcast %156 : vector<8x1xf32> to vector<8x256xf32>
    %160 = arith.subf %154, %159 : vector<8x256xf32>
    %161 = arith.subf %158, %156 : vector<8x1xf32>
    %162 = tpu.reciprocal %161 {approx = true} : vector<8x1xf32> -> vector<8x1xf32>
    %163 = vector.broadcast %162 : vector<8x1xf32> to vector<8x256xf32>
    %164 = arith.mulf %160, %163 : vector<8x256xf32>
    %165 = arith.mulf %114, %139 : vector<8x256xf32>
    %166 = arith.mulf %114, %164 : vector<8x256xf32>
    %167 = arith.addf %165, %166 : vector<8x256xf32>
    %168 = arith.mulf %139, %164 : vector<8x256xf32>
    %169 = arith.addf %167, %168 : vector<8x256xf32>
    %170 = vector.shape_cast %169 : vector<8x256xf32> to vector<1x8x256xf32>
    %cst_69 = arith.constant dense<0.000000e+00> : vector<1xf32>
    %171 = vector.multi_reduction <add>, %170, %cst_69 [1, 2] : vector<1x8x256xf32> to vector<1xf32>
    %172 = vector.shape_cast %171 : vector<1xf32> to vector<1x1x1xf32>
    %173 = vector.extract %172[0, 0, 0] : f32 from vector<1x1x1xf32>
    %cst_70 = arith.constant 0.00130208337 : f32
    %174 = arith.mulf %173, %cst_70 : f32
    %175 = vector.broadcast %174 : f32 to vector<1x1xf32>
    %c0_71 = arith.constant 0 : index
    %c0_72 = arith.constant 0 : index
    %176 = vector.load %arg7[%c0_71, %c0_72] : memref<1x1xf32, #tpu.memory_space<vmem>>, vector<1x1xf32>
    tpu.vector_store %arg7[%c0_71, %c0_72], %175 {strides = array<i32>} : memref<1x1xf32, #tpu.memory_space<vmem>>, vector<1x1xf32>,
    return
  }
  func.func @transform_0(%arg0: i32) -> (i32, i32) {
    %c0_i32 = arith.constant 0 : i32
    %c0_i32_0 = arith.constant 0 : i32
    %c0_i32_1 = arith.constant 0 : i32
    return %c0_i32, %c0_i32_0 : i32, i32
  }
  func.func @transform_1(%arg0: i32) -> (i32, i32) {
    %c0_i32 = arith.constant 0 : i32
    %c0_i32_0 = arith.constant 0 : i32
    %c0_i32_1 = arith.constant 0 : i32
    return %c0_i32, %c0_i32_0 : i32, i32
  }
  func.func @transform_2(%arg0: i32) -> (i32, i32, i32) {
    %c0_i32 = arith.constant 0 : i32
    %c0_i32_0 = arith.constant 0 : i32
    %c0_i32_1 = arith.constant 0 : i32
    %c0_i32_2 = arith.constant 0 : i32
    return %c0_i32, %c0_i32_0, %c0_i32_1 : i32, i32, i32
  }
  func.func @transform_3(%arg0: i32) -> (i32, i32, i32) {
    %c0_i32 = arith.constant 0 : i32
    %c0_i32_0 = arith.constant 0 : i32
    %c0_i32_1 = arith.constant 0 : i32
    %c0_i32_2 = arith.constant 0 : i32
    return %c0_i32, %c0_i32_0, %c0_i32_1 : i32, i32, i32
  }
  func.func @transform_4(%arg0: i32) -> (i32, i32, i32) {
    %c0_i32 = arith.constant 0 : i32
    %c0_i32_0 = arith.constant 0 : i32
    %c0_i32_1 = arith.constant 0 : i32
    %c0_i32_2 = arith.constant 0 : i32
    return %c0_i32, %c0_i32_0, %c0_i32_1 : i32, i32, i32
  }
  func.func @transform_5(%arg0: i32) -> (i32, i32) {
    %c0_i32 = arith.constant 0 : i32
    %c0_i32_0 = arith.constant 0 : i32
    %c0_i32_1 = arith.constant 0 : i32
    return %c0_i32, %c0_i32_0 : i32, i32
  }
  func.func @transform_6(%arg0: i32) -> (i32, i32) {
    %c0_i32 = arith.constant 0 : i32
    %c0_i32_0 = arith.constant 0 : i32
    %c0_i32_1 = arith.constant 0 : i32
    return %c0_i32, %c0_i32_0 : i32, i32
  }
}

</mosaic_0001>

<llo_original>
// kernel: tpu_custom_call.1
$region0: #{tpu_custom_call.1}
  #allocation0 [shape = 'u32[]', space=smem, size = 0x4, offset = 0x4, fixed_abs, tag = 'smem constant byte address 0x4 - core index']
  #allocation1 [shape = 'u32[144,128]{1,0:T(1,128)}', space=vmem, size = 0x12000, scoped, tag = 'internal scratch']
  %s0 = inlined_call_operand.hbm [shape: f32[3,8], index: 0, kind: input, shape index: {}]
  %s1 = inlined_call_operand.hbm [shape: s32[3,8], index: 1, kind: input, shape index: {}]
  %s2 = inlined_call_operand.hbm [shape: f32[4,8,256], index: 2, kind: input, shape index: {}]
  %s3 = inlined_call_operand.hbm [shape: f32[4,8,256], index: 3, kind: input, shape index: {}]
  %s4 = inlined_call_operand.hbm [shape: f32[4,8,256], index: 4, kind: input, shape index: {}]
  %s5 = inlined_call_operand.vmem [shape: f32[3,1], index: 5, kind: output, shape index: {0}]
  %s6 = inlined_call_operand.hbm [shape: f32[1,1], index: 6, kind: output, shape index: {1}]
  %7 = xla_tuple %s5, %s6
  %s8 = sld [smem:[#allocation0]]
  $region58: #{tpu_custom_call.1} parent=0
    _
  %s10 = ssub.s32 1, %s8
  %s11 = scalar_select 0, %s10, %s8
  $region1: #{tpu_custom_call.1} parent=0
    #allocation2 [shape = 'u8[2048]{0}', space=vmem, size = 0x800, scoped, tag = 'input window, operand 0, single buffered']
    #allocation3 [shape = 's32[1]{0}', space=sflag, size = 0x4, scoped, tag = 'scoped memory for tpu_custom_call.1']
    #allocation4 [shape = 's32[1]{0}', space=sflag, size = 0x4, scoped, tag = 'scoped memory for tpu_custom_call.1']
    #allocation5 [shape = 'u8[2048]{0}', space=vmem, size = 0x800, scoped, tag = 'input window, operand 1, single buffered']
    #allocation6 [shape = 's32[1]{0}', space=sflag, size = 0x4, scoped, tag = 'scoped memory for tpu_custom_call.1']
    #allocation7 [shape = 'u8[32768]{0}', space=vmem, size = 0x8000, scoped, tag = 'input window, operand 2, single buffered']
    #allocation8 [shape = 'u8[32768]{0}', space=vmem, size = 0x8000, scoped, tag = 'input window, operand 3, single buffered']
    #allocation9 [shape = 's32[1]{0}', space=sflag, size = 0x4, scoped, tag = 'scoped memory for tpu_custom_call.1']
    #allocation10 [shape = 'u8[32768]{0}', space=vmem, size = 0x8000, scoped, tag = 'input window, operand 4, single buffered']
    #allocation11 [shape = 'u8[512]{0}', space=vmem, size = 0x400, scoped, tag = 'output window, operand 1, single buffered']
    %12 = vsyncpa [#allocation3], 0
    %13 = vsyncpa [#allocation6], 0
    %14 = vsyncpa [#allocation9], 0
    %15 = vsyncpa [#allocation4], 0
    // Predicated region
    $region2: #{tpu_custom_call.1} parent=1 // pred_check
      _
    $region3: #{tpu_custom_call.1} parent=1 // pred_check_branch
      %17 = sbr.rel (0) target = $region5
    $region4: #{tpu_custom_call.1} parent=1 // pred_region
      %s19 = ssub.s32 64, 64
      %20 = vsyncadd [#allocation3], %s19
      %s22 = sshll.u32 [#allocation2], 4
      %s23 = int_to_ptr.vmem [resolvable:$true] %s22
      %25 = dma.hbm_to_vmem [thread:$0]  %s0, 64, %s23, [#allocation3]
    $region5: #{tpu_custom_call.1} parent=1 // pred_fallthru
      _
    // Predicated region
    $region6: #{tpu_custom_call.1} parent=1 // pred_check
      _
    $region7: #{tpu_custom_call.1} parent=1 // pred_check_branch
      %27 = sbr.rel (0) target = $region9
    $region8: #{tpu_custom_call.1} parent=1 // pred_region
      %s29 = ssub.s32 64, 64
      %30 = vsyncadd [#allocation6], %s29
      %s32 = sshll.u32 [#allocation5], 4
      %s33 = int_to_ptr.vmem [resolvable:$true] %s32
      %35 = dma.hbm_to_vmem [thread:$0]  %s1, 64, %s33, [#allocation6]
    $region9: #{tpu_custom_call.1} parent=1 // pred_fallthru
      _
    // Predicated region
    $region10: #{tpu_custom_call.1} parent=1 // pred_check
      _
    $region11: #{tpu_custom_call.1} parent=1 // pred_check_branch
      %37 = sbr.rel (0) target = $region13
    $region12: #{tpu_custom_call.1} parent=1 // pred_region
      %s39 = ssub.s32 1024, 1024
      %40 = vsyncadd [#allocation6], %s39
      %s41 = sshll.u32 [#allocation7], 4
      %s42 = int_to_ptr.vmem [resolvable:$true] %s41
      %47 = dma.hbm_to_vmem [thread:$0]  %s2, 1024, %s42, [#allocation6], 256, 256, 16
    $region13: #{tpu_custom_call.1} parent=1 // pred_fallthru
      _
    // Predicated region
    $region14: #{tpu_custom_call.1} parent=1 // pred_check
      _
    $region15: #{tpu_custom_call.1} parent=1 // pred_check_branch
      %49 = sbr.rel (0) target = $region17
    $region16: #{tpu_custom_call.1} parent=1 // pred_region
      %s51 = ssub.s32 1024, 1024
      %52 = vsyncadd [#allocation9], %s51
      %s53 = sshll.u32 [#allocation8], 4
      %s54 = int_to_ptr.vmem [resolvable:$true] %s53
      %59 = dma.hbm_to_vmem [thread:$0]  %s3, 1024, %s54, [#allocation9], 256, 256, 16
    $region17: #{tpu_custom_call.1} parent=1 // pred_fallthru
      _
    // Predicated region
    $region18: #{tpu_custom_call.1} parent=1 // pred_check
      _
    $region19: #{tpu_custom_call.1} parent=1 // pred_check_branch
      %61 = sbr.rel (0) target = $region21
    $region20: #{tpu_custom_call.1} parent=1 // pred_region
      %s63 = ssub.s32 1024, 1024
      %64 = vsyncadd [#allocation9], %s63
      %s65 = sshll.u32 [#allocation10], 4
      %s66 = int_to_ptr.vmem [resolvable:$true] %s65
      %71 = dma.hbm_to_vmem [thread:$0]  %s4, 1024, %s66, [#allocation9], 256, 256, 16
    $region21: #{tpu_custom_call.1} parent=1 // pred_fallthru
      _
    // Predicated region
    $region22: #{tpu_custom_call.1} parent=1 // pred_check
      _
    $region23: #{tpu_custom_call.1} parent=1 // pred_check_branch
      %73 = sbr.rel (0) target = $region25
    $region24: #{tpu_custom_call.1} parent=1 // pred_region
      %74 = dma.done [#allocation3], 64
    $region25: #{tpu_custom_call.1} parent=1 // pred_fallthru
      _
    // Predicated region
    $region26: #{tpu_custom_call.1} parent=1 // pred_check
      _
    $region27: #{tpu_custom_call.1} parent=1 // pred_check_branch
      %76 = sbr.rel (0) target = $region29
    $region28: #{tpu_custom_call.1} parent=1 // pred_region
      %77 = dma.done [#allocation6], 64
    $region29: #{tpu_custom_call.1} parent=1 // pred_fallthru
      _
    // Predicated region
    $region30: #{tpu_custom_call.1} parent=1 // pred_check
      _
    $region31: #{tpu_custom_call.1} parent=1 // pred_check_branch
      %79 = sbr.rel (0) target = $region33
    $region32: #{tpu_custom_call.1} parent=1 // pred_region
      %80 = dma.done [#allocation6], 1024
    $region33: #{tpu_custom_call.1} parent=1 // pred_fallthru
      _
    // Predicated region
    $region34: #{tpu_custom_call.1} parent=1 // pred_check
      _
    $region35: #{tpu_custom_call.1} parent=1 // pred_check_branch
      %82 = sbr.rel (0) target = $region37
    $region36: #{tpu_custom_call.1} parent=1 // pred_region
      %83 = dma.done [#allocation9], 1024
    $region37: #{tpu_custom_call.1} parent=1 // pred_fallthru
      _
    // Predicated region
    $region38: #{tpu_custom_call.1} parent=1 // pred_check
      _
    $region39: #{tpu_custom_call.1} parent=1 // pred_check_branch
      %85 = sbr.rel (0) target = $region41
    $region40: #{tpu_custom_call.1} parent=1 // pred_region
      %86 = dma.done [#allocation9], 1024
    $region41: #{tpu_custom_call.1} parent=1 // pred_fallthru
      _
    %v87 = vld [vmem:[#allocation2] sm:$0x7]
    %v88 = vld [vmem:[#allocation5] sm:$0x7]
    %v89 = vcvt.s32.f32 %v88
    %v90 = vlaneseq
    %v91 = vshrl.u32 %v90, 7
    %vm92 = vcmp.eq.s32.totalorder %v91, 0
    %v93 = vsel %vm92, 0.25, 0.0
    %vm94 = vcmp.eq.s32.totalorder %v91, 1
    %v95 = vsel %vm94, 0.25, %v93
    %vm96 = vcmp.eq.s32.totalorder %v91, 2
    %v97 = vsel %vm96, 0.2, %v95
    %v98 = vadd.f32 %v89, 1.0
    %v99 = vmul.f32 %v98, %v97
    %vm100 = vcmask 59392
    %v101 = vsel %vm100, %v87, 0.0
    %102 = vadd.xlane.f32.xlu0 %v101
    %v103 = vpop.xlane.xlu0 %102
    %v104 = vrcp.pop 8.0
    %v105 = vmul.f32 %v103, %v104
    %v106 = vsub.f32 %v87, %v105
    %v107 = vmul.f32 %v106, %v106
    %v108 = vsel %vm100, %v107, 0.0
    %109 = vadd.xlane.f32.xlu0 %v108
    %v110 = vpop.xlane.xlu0 %109
    %v111 = vmul.f32 %v110, %v104
    %v112 = vrsqrt.pop %v111
    %v113 = vmul.f32 %v111, %v112
    %vm114 = vcmp.eq.f32.partialorder %v111, inf
    %v115 = vsel %vm114, %v111, %v113
    %vm116 = vcmp.eq.f32.partialorder %v111, 0.0
    %v117 = vand.u32 %v111, 2147483648
    %v118 = vsel %vm116, %v117, %v115
    %v119 = vadd.f32 %v118, 1e-08
    %v120 = vrcp.pop %v119
    %v121 = vmul.f32 %v106, %v120
    %v122 = vsel %vm100, %v99, 0.0
    %123 = vadd.xlane.f32.xlu0 %v122
    %v124 = vpop.xlane.xlu0 %123
    %v125 = vmul.f32 %v124, %v104
    %v126 = vsub.f32 %v99, %v125
    %v127 = vmul.f32 %v126, %v126
    %v128 = vsel %vm100, %v127, 0.0
    %129 = vadd.xlane.f32.xlu0 %v128
    %v130 = vpop.xlane.xlu0 %129
    %v131 = vmul.f32 %v130, %v104
    %v132 = vrsqrt.pop %v131
    %v133 = vmul.f32 %v131, %v132
    %vm134 = vcmp.eq.f32.partialorder %v131, inf
    %v135 = vsel %vm134, %v131, %v133
    %vm136 = vcmp.eq.f32.partialorder %v131, 0.0
    %v137 = vand.u32 %v131, 2147483648
    %v138 = vsel %vm136, %v137, %v135
    %v139 = vadd.f32 %v138, 1e-08
    %v140 = vrcp.pop %v139
    %v141 = vmul.f32 %v126, %v140
    %v142 = vsub.f32 %v121, %v141
    %v143 = vmul.f32 %v142, %v142
    %v144 = vsel %vm100, %v143, 0.0
    %145 = vadd.xlane.f32.xlu0 %v144
    %v146 = vpop.xlane.xlu0 %145
    %v147 = vmul.f32 %v146, %v104
    %v148 = vmul.f32 %v147, 0.25
    %v149 = vmul.f32 %v121, %v141
    %v150 = vsel %vm100, %v149, 0.0
    %151 = vadd.xlane.f32.xlu0 %v150
    %v152 = vpop.xlane.xlu0 %151
    %v153 = vmul.f32 %v152, %v104
    %v154 = vmul.f32 %v153, %v121
    %v155 = vsub.f32 %v154, %v141
    %v156 = vmul.f32 %v155, %v155
    %v157 = vsel %vm100, %v156, 0.0
    %158 = vadd.xlane.f32.xlu0 %v157
    %v159 = vpop.xlane.xlu0 %158
    %v160 = vmul.f32 %v159, %v104
    %v161 = vmul.f32 %v160, 0.25
    %v162 = vadd.f32 %v148, %v161
    %v163 = vmul.f32 %v162, 0.5
    %v164 = vadd.f32 %v163, 0.0
    %vm165 = vcmask 2048
    %166 = vst.msk [vmem:[%s5] sm:$0x7] %vm165, %v164
    %v167 = vld [vmem:[#allocation7] sm:$0xff]
    %v168 = vld [vmem:[#allocation7 + $0x8] sm:$0xff]
    %v169 = vand.u32 2147483647, %v167
    %v170 = vand.u32 2147483647, %v168
    %s171 = scalar_lea.vmem [#allocation7], 16
    %v172 = vld [vmem:[%s171] sm:$0xff]
    %v173 = vld [vmem:[%s171 + $0x8] sm:$0xff]
    %v174 = vand.u32 2147483647, %v172
    %v175 = vand.u32 2147483647, %v173
    %v176 = vadd.f32 %v169, %v174
    %v177 = vadd.f32 %v170, %v175
    %s178 = scalar_lea.vmem [#allocation7], 32
    %v179 = vld [vmem:[%s178] sm:$0xff]
    %v180 = vld [vmem:[%s178 + $0x8] sm:$0xff]
    %v181 = vand.u32 2147483647, %v179
    %v182 = vand.u32 2147483647, %v180
    %v183 = vadd.f32 %v176, %v181
    %v184 = vadd.f32 %v177, %v182
    %s185 = scalar_lea.vmem [#allocation7], 48
    %v186 = vld [vmem:[%s185] sm:$0xff]
    %v187 = vld [vmem:[%s185 + $0x8] sm:$0xff]
    %v188 = vand.u32 2147483647, %v186
    %v189 = vand.u32 2147483647, %v187
    %v190 = vadd.f32 %v183, %v188
    %v191 = vadd.f32 %v184, %v189
    %v192 = vmin.f32 %v190, %v191
    %193 = vmin.xlane.f32.xlu0 %v192
    %v194 = vpop.xlane.xlu0 %193
    %v195 = vmax.f32 %v190, %v191
    %196 = vmax.xlane.f32.xlu0 %v195
    %v197 = vpop.xlane.xlu0 %196
    %v198 = vsub.f32 %v190, %v194
    %v199 = vsub.f32 %v191, %v194
    %v200 = vsub.f32 %v197, %v194
    %v201 = vrcp.pop %v200
    %v202 = vmul.f32 %v198, %v201
    %v203 = vmul.f32 %v199, %v201
    %v204 = vld [vmem:[#allocation8] sm:$0xff]
    %v205 = vld [vmem:[#allocation8 + $0x8] sm:$0xff]
    %v206 = vand.u32 2147483647, %v204
    %v207 = vand.u32 2147483647, %v205
    %s208 = scalar_lea.vmem [#allocation8], 16
    %v209 = vld [vmem:[%s208] sm:$0xff]
    %v210 = vld [vmem:[%s208 + $0x8] sm:$0xff]
    %v211 = vand.u32 2147483647, %v209
    %v212 = vand.u32 2147483647, %v210
    %v213 = vadd.f32 %v206, %v211
    %v214 = vadd.f32 %v207, %v212
    %s215 = scalar_lea.vmem [#allocation8], 32
    %v216 = vld [vmem:[%s215] sm:$0xff]
    %v217 = vld [vmem:[%s215 + $0x8] sm:$0xff]
    %v218 = vand.u32 2147483647, %v216
    %v219 = vand.u32 2147483647, %v217
    %v220 = vadd.f32 %v213, %v218
    %v221 = vadd.f32 %v214, %v219
    %s222 = scalar_lea.vmem [#allocation8], 48
    %v223 = vld [vmem:[%s222] sm:$0xff]
    %v224 = vld [vmem:[%s222 + $0x8] sm:$0xff]
    %v225 = vand.u32 2147483647, %v223
    %v226 = vand.u32 2147483647, %v224
    %v227 = vadd.f32 %v220, %v225
    %v228 = vadd.f32 %v221, %v226
    %v229 = vmin.f32 %v227, %v228
    %230 = vmin.xlane.f32.xlu0 %v229
    %v231 = vpop.xlane.xlu0 %230
    %v232 = vmax.f32 %v227, %v228
    %233 = vmax.xlane.f32.xlu0 %v232
    %v234 = vpop.xlane.xlu0 %233
    %v235 = vsub.f32 %v227, %v231
    %v236 = vsub.f32 %v228, %v231
    %v237 = vsub.f32 %v234, %v231
    %v238 = vrcp.pop %v237
    %v239 = vmul.f32 %v235, %v238
    %v240 = vmul.f32 %v236, %v238
    %v241 = vld [vmem:[#allocation10] sm:$0xff]
    %v242 = vld [vmem:[#allocation10 + $0x8] sm:$0xff]
    %v243 = vand.u32 2147483647, %v241
    %v244 = vand.u32 2147483647, %v242
    %s245 = scalar_lea.vmem [#allocation10], 16
    %v246 = vld [vmem:[%s245] sm:$0xff]
    %v247 = vld [vmem:[%s245 + $0x8] sm:$0xff]
    %v248 = vand.u32 2147483647, %v246
    %v249 = vand.u32 2147483647, %v247
    %v250 = vadd.f32 %v243, %v248
    %v251 = vadd.f32 %v244, %v249
    %s252 = scalar_lea.vmem [#allocation10], 32
    %v253 = vld [vmem:[%s252] sm:$0xff]
    %v254 = vld [vmem:[%s252 + $0x8] sm:$0xff]
    %v255 = vand.u32 2147483647, %v253
    %v256 = vand.u32 2147483647, %v254
    %v257 = vadd.f32 %v250, %v255
    %v258 = vadd.f32 %v251, %v256
    %s259 = scalar_lea.vmem [#allocation10], 48
    %v260 = vld [vmem:[%s259] sm:$0xff]
    %v261 = vld [vmem:[%s259 + $0x8] sm:$0xff]
    %v262 = vand.u32 2147483647, %v260
    %v263 = vand.u32 2147483647, %v261
    %v264 = vadd.f32 %v257, %v262
    %v265 = vadd.f32 %v258, %v263
    %v266 = vmin.f32 %v264, %v265
    %267 = vmin.xlane.f32.xlu0 %v266
    %v268 = vpop.xlane.xlu0 %267
    %v269 = vmax.f32 %v264, %v265
    %270 = vmax.xlane.f32.xlu0 %v269
    %v271 = vpop.xlane.xlu0 %270
    %v272 = vsub.f32 %v264, %v268
    %v273 = vsub.f32 %v265, %v268
    %v274 = vsub.f32 %v271, %v268
    %v275 = vrcp.pop %v274
    %v276 = vmul.f32 %v272, %v275
    %v277 = vmul.f32 %v273, %v275
    %v278 = vmul.f32 %v202, %v239
    %v279 = vmul.f32 %v203, %v240
    %v280 = vmul.f32 %v202, %v276
    %v281 = vmul.f32 %v203, %v277
    %v282 = vadd.f32 %v278, %v280
    %v283 = vadd.f32 %v279, %v281
    %v284 = vmul.f32 %v239, %v276
    %v285 = vmul.f32 %v240, %v277
    %v286 = vadd.f32 %v282, %v284
    %v287 = vadd.f32 %v283, %v285
    %v288 = vadd.f32 %v286, %v287
    %289 = vadd.xlane.f32.xlu0 %v288
    %v290 = vpop.xlane.xlu0 %289
    %v291 = vrot.slane %v290, 4
    %v292 = vadd.f32 %v290, %v291
    %v293 = vrot.slane %v292, 2
    %v294 = vadd.f32 %v292, %v293
    %v295 = vrot.slane %v294, 1
    %v296 = vadd.f32 %v294, %v295
    %s297 = vtos %v296
    %s298 = smul.f32 %s297, 0.0013020834
    %v299 = vstv %s298
    %vm300 = vcmask 0
    %301 = vst.msk [vmem:[#allocation11] sm:$0x1] %vm300, %v299
    // Predicated region
    $region42: #{tpu_custom_call.1} parent=1 // pred_check
      _
    $region43: #{tpu_custom_call.1} parent=1 // pred_check_branch
      %303 = sbr.rel (0) target = $region45
    $region44: #{tpu_custom_call.1} parent=1 // pred_region
      _
    $region45: #{tpu_custom_call.1} parent=1 // pred_fallthru
      _
    // Predicated region
    $region46: #{tpu_custom_call.1} parent=1 // pred_check
      _
    $region47: #{tpu_custom_call.1} parent=1 // pred_check_branch
      %305 = sbr.rel (0) target = $region49
    $region48: #{tpu_custom_call.1} parent=1 // pred_region
      %s307 = ssub.s32 16, 16
      %308 = vsyncadd [#allocation4], %s307
      %s310 = sshll.u32 [#allocation11], 4
      %s311 = int_to_ptr.vmem [resolvable:$true] %s310
      %313 = dma.vmem_to_hbm [thread:$0]  %s311, 16, %s6, [#allocation4]
    $region49: #{tpu_custom_call.1} parent=1 // pred_fallthru
      _
    // Predicated region
    $region50: #{tpu_custom_call.1} parent=1 // pred_check
      _
    $region51: #{tpu_custom_call.1} parent=1 // pred_check_branch
      %315 = sbr.rel (0) target = $region53
    $region52: #{tpu_custom_call.1} parent=1 // pred_region
      _
    $region53: #{tpu_custom_call.1} parent=1 // pred_fallthru
      _
    // Predicated region
    $region54: #{tpu_custom_call.1} parent=1 // pred_check
      _
    $region55: #{tpu_custom_call.1} parent=1 // pred_check_branch
      %317 = sbr.rel (0) target = $region57
    $region56: #{tpu_custom_call.1} parent=1 // pred_region
      %318 = dma.done [#allocation4], 16
    $region57: #{tpu_custom_call.1} parent=1 // pred_fallthru
      _
    %319 = vsyncpa [#allocation3], 1
    %320 = vsyncpa [#allocation6], 1
    %321 = vsyncpa [#allocation9], 1
    %322 = vsyncpa [#allocation4], 1

</llo_original>
